<compile_context>
chip_gen: v7x
topology: tpu7x:2x2x1
jax: 0.10.0
libtpu: 0.0.40
codegen_flags: <defaults>
</compile_context>

<pallas_src>
import jax
import jax.numpy as jnp
from jax.experimental import pallas as pl
from jax.experimental.pallas import tpu as pltpu

HIDDEN = 32


def _make_mlp_kernel(use_bf16):
    act_dtype = jnp.bfloat16 if use_bf16 else jnp.float32

    def _mlp_kernel(t_ref, vecs_ref, w2t_ref, o_ref):
        # t_ref:    (1, L)   normalized times, batch along lanes
        # vecs_ref: (32, 8)  packed [w1 | b1 | b2 | w3 | b3 | pad...]
        # w2t_ref:  (32, 32) layer-2 weight, (out, in) layout
        # o_ref:    (1, L)
        t = t_ref[...]                       # (1, L) f32
        vecs = vecs_ref[...]                 # (32, 8) f32
        w1 = vecs[:, 0:1]                    # (32, 1)
        b1 = vecs[:, 1:2]                    # (32, 1)
        b2 = vecs[:, 2:3]                    # (32, 1)
        w3 = vecs[:, 3:4]                    # (32, 1)
        b3 = vecs[0:1, 4:5]                  # (1, 1)

        # Layer 1 on the VPU: h1[f, n] = tanh(w1[f] * t[n] + b1[f])   -> (32, L)
        z1 = w1 * t + b1
        h1 = jnp.tanh(z1.astype(act_dtype))  # bf16 tanh halves EUP load on v6e/v7x

        # Layer 2 on the MXU, lane-dense output: (32,32) @ (32,L) -> (32, L)
        # bf16 inputs (opt-in) avoid the 3-6x f32-emulation MXU passes; f32 accumulate.
        z2 = jnp.dot(
            w2t_ref[...].astype(act_dtype), h1, preferred_element_type=jnp.float32
        ) + b2
        h2 = jnp.tanh(z2.astype(act_dtype)).astype(jnp.float32)

        # Layer 3 on VPU + XLU sublane reduce: y[n] = sum_f w3[f]*h2[f,n] + b3
        o_ref[...] = jnp.sum(w3 * h2, axis=0, keepdims=True) + b3

    return _mlp_kernel


def _choose_tile_lanes(n):
    """Pick a lane-tile that amortizes per-step overhead without blowing VMEM.

    * big tiles: ~0.35 us fixed pipeline overhead per grid step, so go wide;
    * >= 2 grid steps when possible so the "parallel" axis shards across both
      TensorCores on v7x;
    * cap at 16384 lanes: ~8 MiB of (32, L) f32 intermediates, comfortable even
      under v7x's 64 MiB/TC physical VMEM (32 MiB default scoped).
    """
    max_tile = 16384
    half = max(n // 2, 1)
    return min(max_tile, max(128, (half // 128) * 128))


def pinn_forward(t_normalized, params, *, tile_lanes=None, use_bf16=False):
    """Pallas forward for PINNLearnR.net.

    t_normalized: (N, 1) float32.  Returns (N, 1) float32.
    tile_lanes: samples per grid step (multiple of 128); None -> auto-sized.
    use_bf16:   run tanh layers / MXU inputs in bf16 (v6e/v7x only; keep False
                on v5e and when validating at tight tolerance).
    """
    w1, b1, w2, b2, w3, b3 = params
    n = t_normalized.shape[0]

    if tile_lanes is None:
        tile_lanes = _choose_tile_lanes(n)
    assert tile_lanes % 128 == 0, "tile_lanes must be a multiple of 128"

    # Lane-dense view of the batch; no wrapper-side padding (Pallas masks the
    # ragged last block; padded lanes never mix with valid lanes in-kernel).
    t_row = t_normalized.reshape(1, n).astype(jnp.float32)

    # Pack all small vectors into a single (32, 8) slab (one vreg tile).
    vecs = jnp.zeros((HIDDEN, 8), jnp.float32)
    vecs = vecs.at[:, 0].set(w1.reshape(-1))                       # layer-1 weight
    vecs = vecs.at[:, 1].set(b1.reshape(-1))                       # layer-1 bias
    vecs = vecs.at[:, 2].set(b2.reshape(-1))                       # layer-2 bias
    vecs = vecs.at[:, 3].set(w3.reshape(-1))                       # layer-3 weight
    vecs = vecs.at[:, 4].set(jnp.full((HIDDEN,), b3.reshape(())))  # layer-3 bias

    # Layer-2 weight in (out, in) layout so h2 = w2t @ h1.
    w2t = w2.T

    grid = (pl.cdiv(n, tile_lanes),)

    # Explicit VMEM budget: ~6 live (32, L) f32 temporaries + double-buffered
    # (1, L) I/O, with 2x headroom; clamp to [32 MiB, 64 MiB] (v7x physical/TC).
    act_bytes = 6 * HIDDEN * tile_lanes * 4
    io_bytes = 2 * 2 * tile_lanes * 4
    vmem_limit = int(min(64 << 20, max(32 << 20, 2 * (act_bytes + io_bytes))))

    out_row = pl.pallas_call(
        _make_mlp_kernel(use_bf16),
        out_shape=jax.ShapeDtypeStruct((1, n), jnp.float32),
        grid_spec=pltpu.PrefetchScalarGridSpec(
            num_scalar_prefetch=0,
            grid=grid,
            in_specs=[
                pl.BlockSpec((1, tile_lanes), lambda i: (0, i)),   # t (lane-dense)
                pl.BlockSpec((HIDDEN, 8), lambda i: (0, 0)),       # packed vectors
                pl.BlockSpec((HIDDEN, HIDDEN), lambda i: (0, 0)),  # w2^T
            ],
            out_specs=pl.BlockSpec((1, tile_lanes), lambda i: (0, i)),
        ),
        compiler_params=pltpu.CompilerParams(
            dimension_semantics=("parallel",),
            vmem_limit_bytes=vmem_limit,
        ),
    )(t_row, vecs, w2t)

    return out_row.reshape(n, 1)


def init_params(key):
    """Deterministic init mimicking PyTorch Linear default (U(-1/sqrt(fan_in), +))."""
    k1, k2, k3, k4, k5, k6 = jax.random.split(key, 6)

    def lin(kw, kb, fan_in, fan_out):
        bound = 1.0 / jnp.sqrt(jnp.float32(fan_in))
        w = jax.random.uniform(kw, (fan_in, fan_out), jnp.float32, -bound, bound)
        b = jax.random.uniform(kb, (1, fan_out), jnp.float32, -bound, bound)
        return w, b

    w1, b1 = lin(k1, k2, 1, HIDDEN)
    w2, b2 = lin(k3, k4, HIDDEN, HIDDEN)
    w3, b3 = lin(k5, k6, HIDDEN, 1)
    return (w1, b1, w2, b2, w3, b3)


def reference_forward(t, params):
    w1, b1, w2, b2, w3, b3 = params
    h1 = jnp.tanh(t @ w1 + b1)
    h2 = jnp.tanh(h1 @ w2 + b2)
    return h2 @ w3 + b3


if __name__ == "__main__":
    key = jax.random.PRNGKey(0)
    kp, kt1, kt2 = jax.random.split(key, 3)

    params = init_params(kp)
    # `r` parameter of PINNLearnR (unused in forward, kept for fidelity).
    r = jnp.array([0.01], dtype=jnp.float32)
    # TODO(synk): `r` only participates in the physics loss, not in forward().

    # 1) Small ragged batch: multi-step grid (tile_lanes=128 -> 3 steps) with a
    #    Pallas-masked partial last block (300 = 2*128 + 44).
    n1 = 300
    t1 = jax.random.uniform(kt1, (n1, 1), jnp.float32, 0.0, 1.0)
    out1 = jax.block_until_ready(pinn_forward(t1, params, tile_lanes=128))
    ref1 = reference_forward(t1, params)
    assert out1.shape == (n1, 1)
    assert jnp.allclose(out1, ref1, atol=1e-5, rtol=1e-5)

    # 2) Auto-sized large-tile path (>= 2 grid steps, ragged last block).
    n2 = 3000
    t2 = jax.random.uniform(kt2, (n2, 1), jnp.float32, 0.0, 1.0)
    out2 = jax.block_until_ready(pinn_forward(t2, params))
    ref2 = reference_forward(t2, params)
    assert out2.shape == (n2, 1)
    assert jnp.allclose(out2, ref2, atol=1e-5, rtol=1e-5)

    print("KERNEL_OK")
</pallas_src>

<mosaic_0001>
module attributes {stable_mosaic.version = 11 : i64} {
  func.func @_mlp_kernel(%arg0: i32, %arg1: memref<1x128xf32, #tpu.memory_space<vmem>>, %arg2: memref<32x8xf32, #tpu.memory_space<vmem>>, %arg3: memref<32x32xf32, #tpu.memory_space<vmem>>, %arg4: memref<1x128xf32, #tpu.memory_space<vmem>>) attributes {dimension_semantics = [#tpu.dimension_semantics<parallel>], iteration_bounds = array<i64: 3>, scalar_prefetch = 0 : i64, scratch_operands = 0 : i64, tpu.core_type = #tpu.core_type<tc>, window_params = [{transform_indices = @transform_0, window_bounds = array<i64: 1, 128>}, {pipeline_mode = #tpu.pipeline_mode<synchronous>, transform_indices = @transform_1, window_bounds = array<i64: 32, 8>}, {pipeline_mode = #tpu.pipeline_mode<synchronous>, transform_indices = @transform_2, window_bounds = array<i64: 32, 32>}, {transform_indices = @transform_3, window_bounds = array<i64: 1, 128>}]} {
    %c0 = arith.constant 0 : index
    %c0_0 = arith.constant 0 : index
    %0 = vector.load %arg1[%c0, %c0_0] : memref<1x128xf32, #tpu.memory_space<vmem>>, vector<1x128xf32>
    %c0_1 = arith.constant 0 : index
    %c0_2 = arith.constant 0 : index
    %1 = vector.load %arg2[%c0_1, %c0_2] : memref<32x8xf32, #tpu.memory_space<vmem>>, vector<32x8xf32>
    %2 = vector.extract_strided_slice %1 {offsets = [0, 0], sizes = [32, 1], strides = [1, 1]} : vector<32x8xf32> to vector<32x1xf32>
    %3 = vector.extract_strided_slice %1 {offsets = [0, 1], sizes = [32, 1], strides = [1, 1]} : vector<32x8xf32> to vector<32x1xf32>
    %4 = vector.extract_strided_slice %1 {offsets = [0, 2], sizes = [32, 1], strides = [1, 1]} : vector<32x8xf32> to vector<32x1xf32>
    %5 = vector.extract_strided_slice %1 {offsets = [0, 3], sizes = [32, 1], strides = [1, 1]} : vector<32x8xf32> to vector<32x1xf32>
    %6 = vector.extract_strided_slice %1 {offsets = [0, 4], sizes = [1, 1], strides = [1, 1]} : vector<32x8xf32> to vector<1x1xf32>
    %7 = vector.broadcast %2 : vector<32x1xf32> to vector<32x128xf32>
    %8 = vector.broadcast %0 : vector<1x128xf32> to vector<32x128xf32>
    %9 = arith.mulf %7, %8 : vector<32x128xf32>
    %10 = vector.broadcast %3 : vector<32x1xf32> to vector<32x128xf32>
    %11 = arith.addf %9, %10 : vector<32x128xf32>
    %12 = math.tanh %11 : vector<32x128xf32>
    %c0_3 = arith.constant 0 : index
    %c0_4 = arith.constant 0 : index
    %13 = vector.load %arg3[%c0_3, %c0_4] : memref<32x32xf32, #tpu.memory_space<vmem>>, vector<32x32xf32>
    %cst = arith.constant dense<0.000000e+00> : vector<32x128xf32>
    %14 = tpu.matmul %13, %12, %cst {dimension_numbers = #tpu.dot_dimension_numbers<[1], [0], [0], [1], [0, 0, 1, 1], [], []>} : vector<32x32xf32>, vector<32x128xf32>, vector<32x128xf32> -> vector<32x128xf32>
    %15 = vector.broadcast %4 : vector<32x1xf32> to vector<32x128xf32>
    %16 = arith.addf %14, %15 : vector<32x128xf32>
    %17 = math.tanh %16 : vector<32x128xf32>
    %18 = vector.broadcast %5 : vector<32x1xf32> to vector<32x128xf32>
    %19 = arith.mulf %18, %17 : vector<32x128xf32>
    %cst_5 = arith.constant dense<0.000000e+00> : vector<128xf32>
    %20 = vector.multi_reduction <add>, %19, %cst_5 [0] : vector<32x128xf32> to vector<128xf32>
    %21 = vector.shape_cast %20 : vector<128xf32> to vector<1x128xf32>
    %22 = vector.broadcast %6 : vector<1x1xf32> to vector<1x128xf32>
    %23 = arith.addf %21, %22 : vector<1x128xf32>
    %c0_6 = arith.constant 0 : index
    %c0_7 = arith.constant 0 : index
    %24 = vector.load %arg4[%c0_6, %c0_7] : memref<1x128xf32, #tpu.memory_space<vmem>>, vector<1x128xf32>
    tpu.vector_store %arg4[%c0_6, %c0_7], %23 {strides = array<i32>} : memref<1x128xf32, #tpu.memory_space<vmem>>, vector<1x128xf32>,
    return
  }
  func.func @transform_0(%arg0: i32) -> (i32, i32) {
    %c0_i32 = arith.constant 0 : i32
    %c0_i32_0 = arith.constant 0 : i32
    return %c0_i32, %arg0 : i32, i32
  }
  func.func @transform_1(%arg0: i32) -> (i32, i32) {
    %c0_i32 = arith.constant 0 : i32
    %c0_i32_0 = arith.constant 0 : i32
    %c0_i32_1 = arith.constant 0 : i32
    return %c0_i32, %c0_i32_0 : i32, i32
  }
  func.func @transform_2(%arg0: i32) -> (i32, i32) {
    %c0_i32 = arith.constant 0 : i32
    %c0_i32_0 = arith.constant 0 : i32
    %c0_i32_1 = arith.constant 0 : i32
    return %c0_i32, %c0_i32_0 : i32, i32
  }
  func.func @transform_3(%arg0: i32) -> (i32, i32) {
    %c0_i32 = arith.constant 0 : i32
    %c0_i32_0 = arith.constant 0 : i32
    return %c0_i32, %arg0 : i32, i32
  }
}

</mosaic_0001>

<llo_original>
// kernel: tpu_custom_call.1
$region0: #{tpu_custom_call.1}
  #allocation0 [shape = 'u32[]', space=smem, size = 0x4, offset = 0x4, fixed_abs, tag = 'smem constant byte address 0x4 - core index']
  #allocation1 [shape = 'u32[144,128]{1,0:T(1,128)}', space=vmem, size = 0x12000, scoped, tag = 'internal scratch']
  %s0 = inlined_call_operand.vmem [shape: f32[1,300], index: 0, kind: input, shape index: {}]
  %s1 = inlined_call_operand.vmem [shape: f32[32,8], index: 1, kind: input, shape index: {}]
  %s2 = inlined_call_operand.vmem [shape: f32[32,32], index: 2, kind: input, shape index: {}]
  %s3 = inlined_call_operand.hbm [shape: f32[1,300], index: 3, kind: output, shape index: {}]
  %s4 = sld [smem:[#allocation0]]
  $region45: #{tpu_custom_call.1} parent=0
    _
  %s6 = ssub.s32 1, %s4
  %s7 = scalar_select 0, %s6, %s4
  $region1: #{tpu_custom_call.1} parent=0
    #allocation2 [shape = 'u8[1024]{0}', space=vmem, size = 0x400, scoped, tag = 'output window, operand 0']
    #allocation3 [shape = 's32[2]{0}', space=sflag, size = 0x8, scoped, tag = 'scoped memory for tpu_custom_call.1']
    %8 = vsyncpa [#allocation3], 0
    %s9 = scalar_lea.sflag [#allocation3], 1
    %10 = vsyncpa %s9, 0
    loop: start=0, step=1, limit=5
    $region2: #{tpu_custom_call.1} parent=1 // loop_pre_header
      _
    $region3: #{tpu_custom_call.1} parent=1 // loop_header
      %s12 = sphi 0, %s16
      %p13 = scmp.ge.s32.totalorder %s12, 5
      %s22 = sphi 0, %s24
      %s25 = sphi 0, %s22
      %s26 = sphi 0, %s25
      %s42 = sphi 0, %s26
      %s46 = sphi 0, %s46
      %s48 = sphi 0, %s46
      %s49 = sphi 0, %s48
      %s63 = sphi 0, %s49
      %s67 = sphi 0, %s67
      %s69 = sphi 0, %s67
      %s70 = sphi 0, %s69
      %s84 = sphi 0, %s70
      %s90 = sphi 0, %s92
      %s93 = sphi 0, %s90
      %s94 = sphi 0, %s93
      %s110 = sphi 0, %s94
    $region4: #{tpu_custom_call.1} parent=1 // loop_header_branch
      %15 = sbr.rel (%p13) target = $region8
    $region5: #{tpu_custom_call.1} parent=1 // loop_body
      %s17 = ssub.s32 %s12, 1
      %s18 = ssub.s32 %s12, 2
      %s19 = sadd.s32 %s12, 1
      %s20 = ssub.s32 %s12, %s19
      %p21 = scmp.eq.s32.totalorder %s20, 0
      %s23 = sadd.s32 %s22, 1
      %s24 = scalar_select %p21, %s22, %s23
      %p27 = pneg %p21
      %p28 = scmp.eq.s32.totalorder %s12, 2
      %p29 = por %p27, %p28
      %p30 = scmp.ne.s32.totalorder %s22, %s25
      %p31 = scmp.eq.s32.totalorder %s12, 0
      %p32 = por %p30, %p31
      %p33 = scmp.ne.s32.totalorder %s22, %s25
      %p34 = scmp.eq.s32.totalorder %s17, 2
      %p35 = por %p33, %p34
      %p36 = scmp.ne.s32.totalorder %s25, %s26
      %p37 = scmp.eq.s32.totalorder %s17, 0
      %p38 = por %p36, %p37
      %p39 = scmp.ne.s32.totalorder %s25, %s26
      %p40 = scmp.eq.s32.totalorder %s18, 2
      %p41 = por %p39, %p40
      %p43 = scmp.ne.s32.totalorder %s26, %s42
      %p44 = scmp.eq.s32.totalorder %s18, 0
      %p45 = por %p43, %p44
      %s47 = sadd.s32 %s46, 1
      %p50 = scmp.eq.s32.totalorder %s12, 2
      %p51 = scmp.ne.s32.totalorder %s46, %s48
      %p52 = scmp.eq.s32.totalorder %s12, 0
      %p53 = por %p51, %p52
      %p54 = scmp.ne.s32.totalorder %s46, %s48
      %p55 = scmp.eq.s32.totalorder %s17, 2
      %p56 = por %p54, %p55
      %p57 = scmp.ne.s32.totalorder %s48, %s49
      %p58 = scmp.eq.s32.totalorder %s17, 0
      %p59 = por %p57, %p58
      %p60 = scmp.ne.s32.totalorder %s48, %s49
      %p61 = scmp.eq.s32.totalorder %s18, 2
      %p62 = por %p60, %p61
      %p64 = scmp.ne.s32.totalorder %s49, %s63
      %p65 = scmp.eq.s32.totalorder %s18, 0
      %p66 = por %p64, %p65
      %s68 = sadd.s32 %s67, 1
      %p71 = scmp.eq.s32.totalorder %s12, 2
      %p72 = scmp.ne.s32.totalorder %s67, %s69
      %p73 = scmp.eq.s32.totalorder %s12, 0
      %p74 = por %p72, %p73
      %p75 = scmp.ne.s32.totalorder %s67, %s69
      %p76 = scmp.eq.s32.totalorder %s17, 2
      %p77 = por %p75, %p76
      %p78 = scmp.ne.s32.totalorder %s69, %s70
      %p79 = scmp.eq.s32.totalorder %s17, 0
      %p80 = por %p78, %p79
      %p81 = scmp.ne.s32.totalorder %s69, %s70
      %p82 = scmp.eq.s32.totalorder %s18, 2
      %p83 = por %p81, %p82
      %p85 = scmp.ne.s32.totalorder %s70, %s84
      %p86 = scmp.eq.s32.totalorder %s18, 0
      %p87 = por %p85, %p86
      %s88 = ssub.s32 %s12, %s19
      %p89 = scmp.eq.s32.totalorder %s88, 0
      %s91 = sadd.s32 %s90, 1
      %s92 = scalar_select %p89, %s90, %s91
      %p95 = pneg %p89
      %p96 = scmp.eq.s32.totalorder %s12, 2
      %p97 = por %p95, %p96
      %p98 = scmp.ne.s32.totalorder %s90, %s93
      %p99 = scmp.eq.s32.totalorder %s12, 0
      %p100 = por %p98, %p99
      %p101 = scmp.ne.s32.totalorder %s90, %s93
      %p102 = scmp.eq.s32.totalorder %s17, 2
      %p103 = por %p101, %p102
      %p104 = scmp.ne.s32.totalorder %s93, %s94
      %p105 = scmp.eq.s32.totalorder %s17, 0
      %p106 = por %p104, %p105
      %p107 = scmp.ne.s32.totalorder %s93, %s94
      %p108 = scmp.eq.s32.totalorder %s18, 2
      %p109 = por %p107, %p108
      %p111 = scmp.ne.s32.totalorder %s94, %s110
      %p112 = scmp.eq.s32.totalorder %s18, 0
      %p113 = por %p111, %p112
      %p114 = scmp.le.s32.totalorder 1, %s12
      %p115 = scmp.lt.s32.totalorder %s12, 4
      %p116 = pnand %p114, %p115
      %p117 = pneg %p116
      // Predicated region
      $region9: #{tpu_custom_call.1} parent=5 // pred_check
        _
      $region10: #{tpu_custom_call.1} parent=5 // pred_check_branch
        %119 = sbr.rel (%p116) target = $region12
      $region11: #{tpu_custom_call.1} parent=5 // pred_region
        %s120 = ssub.s32 %s12, 1
        // Predicated region
        $region13: #{tpu_custom_call.1} parent=11 // pred_check
          %p121 = pneg %p59
        $region14: #{tpu_custom_call.1} parent=11 // pred_check_branch
          %123 = sbr.rel (%p121) target = $region16
        $region15: #{tpu_custom_call.1} parent=11 // pred_region
          _
        $region16: #{tpu_custom_call.1} parent=11 // pred_fallthru
          _
        // Predicated region
        $region17: #{tpu_custom_call.1} parent=11 // pred_check
          %p124 = pneg %p80
        $region18: #{tpu_custom_call.1} parent=11 // pred_check_branch
          %126 = sbr.rel (%p124) target = $region20
        $region19: #{tpu_custom_call.1} parent=11 // pred_region
          _
        $region20: #{tpu_custom_call.1} parent=11 // pred_fallthru
          _
      $region12: #{tpu_custom_call.1} parent=5 // pred_fallthru
        _
      %p127 = scmp.lt.s32.totalorder %s12, 3
      // Predicated region
      $region21: #{tpu_custom_call.1} parent=5 // pred_check
        %p128 = pneg %p127
      $region22: #{tpu_custom_call.1} parent=5 // pred_check_branch
        %130 = sbr.rel (%p128) target = $region24
      $region23: #{tpu_custom_call.1} parent=5 // pred_region
        // Predicated region
        $region25: #{tpu_custom_call.1} parent=23 // pred_check
          %p131 = pneg %p32
        $region26: #{tpu_custom_call.1} parent=23 // pred_check_branch
          %133 = sbr.rel (%p131) target = $region28
        $region27: #{tpu_custom_call.1} parent=23 // pred_region
          %p134 = scmp.lt.s32.totalorder %s12, 2
          %s135 = scalar_select %p134, %s12, 2
          %s136 = scalar_lea.vmem %s0, %s135
        $region28: #{tpu_custom_call.1} parent=23 // pred_fallthru
          _
      $region24: #{tpu_custom_call.1} parent=5 // pred_fallthru
        _
      %p137 = scmp.le.s32.totalorder 1, %s12
      %p138 = scmp.lt.s32.totalorder %s12, 4
      %p139 = pnand %p137, %p138
      %p140 = pneg %p139
      // Predicated region
      $region29: #{tpu_custom_call.1} parent=5 // pred_check
        _
      $region30: #{tpu_custom_call.1} parent=5 // pred_check_branch
        %142 = sbr.rel (%p139) target = $region32
      $region31: #{tpu_custom_call.1} parent=5 // pred_region
        %s143 = ssub.s32 %s12, 1
        %p144 = scmp.lt.s32.totalorder %s17, 2
        %s145 = scalar_select %p144, %s17, 2
        %s146 = scalar_lea.vmem %s0, %s145
        %p147 = pneg %p38
        %p148 = pneg %p35
        %p149 = pneg %p59
        %p150 = pneg %p56
        %p151 = pneg %p80
        %p152 = pneg %p77
        %p153 = pneg %p106
        %p154 = pneg %p103
        %s155 = sand.u32 %s93, 1
        %s156 = scalar_lea.sflag [#allocation3], %s155
        %s157 = sand.u32 %s93, 1
        %s158 = scalar_lea.vmem [#allocation2], %s157
        %p159 = scmp.lt.s32.totalorder %s17, 2
        %s160 = scalar_select %p159, %s17, 2
        %s161 = scalar_lea.vmem %s0, %s160
        %v162 = vld [vmem:[%s161] sm:$0x1]
        %v163 = vld [vmem:[%s1] sm:$0xff]
        %v164 = vld [vmem:[%s1 + $0x8] sm:$0xff]
        %v165 = vld [vmem:[%s1 + $0x10] sm:$0xff]
        %v166 = vld [vmem:[%s1 + $0x18] sm:$0xff]
        %168 = vset.pattern.permute.xlu0 0
        %169 = vperm.xlu0 %168, %v163
        %v170 = vpop.permute.xlu0 %169
        %173 = vset.pattern.permute.xlu0 0
        %174 = vperm.xlu0 %173, %v164
        %v175 = vpop.permute.xlu0 %174
        %178 = vset.pattern.permute.xlu0 0
        %179 = vperm.xlu0 %178, %v165
        %v180 = vpop.permute.xlu0 %179
        %183 = vset.pattern.permute.xlu0 0
        %184 = vperm.xlu0 %183, %v166
        %v185 = vpop.permute.xlu0 %184
        %v188 = vlaneseq
        %v189 = vshrl.u32 %v188, 7
        %v190 = vsub.s32 0, %v189
        %v191 = vrot.slane %v162, %v190
        %v193 = vmul.f32 %v170, %v191
        %v194 = vmul.f32 %v175, %v191
        %v195 = vmul.f32 %v180, %v191
        %v196 = vmul.f32 %v185, %v191
        %197 = vset.pattern.permute.xlu0 1
        %198 = vperm.xlu0 %197, %v163
        %v199 = vpop.permute.xlu0 %198
        %201 = vset.pattern.permute.xlu0 1
        %202 = vperm.xlu0 %201, %v164
        %v203 = vpop.permute.xlu0 %202
        %205 = vset.pattern.permute.xlu0 1
        %206 = vperm.xlu0 %205, %v165
        %v207 = vpop.permute.xlu0 %206
        %209 = vset.pattern.permute.xlu0 1
        %210 = vperm.xlu0 %209, %v166
        %v211 = vpop.permute.xlu0 %210
        %v213 = vadd.f32 %v193, %v199
        %v214 = vadd.f32 %v194, %v203
        %v215 = vadd.f32 %v195, %v207
        %v216 = vadd.f32 %v196, %v211
        %v217 = vtanh.pop %v213
        %v218 = vtanh.pop %v214
        %v219 = vtanh.pop %v215
        %v220 = vtanh.pop %v216
        %v221 = vld [vmem:[%s2] sm:$0xff]
        %v222 = vld [vmem:[%s2 + $0x8] sm:$0xff]
        %v223 = vld [vmem:[%s2 + $0x10] sm:$0xff]
        %v224 = vld [vmem:[%s2 + $0x18] sm:$0xff]
        %225 = vset.pattern.permute.xlu0 2
        %226 = vperm.xlu0 %225, %v163
        %v227 = vpop.permute.xlu0 %226
        %229 = vset.pattern.permute.xlu0 2
        %230 = vperm.xlu0 %229, %v164
        %v231 = vpop.permute.xlu0 %230
        %233 = vset.pattern.permute.xlu0 2
        %234 = vperm.xlu0 %233, %v165
        %v235 = vpop.permute.xlu0 %234
        %237 = vset.pattern.permute.xlu0 2
        %238 = vperm.xlu0 %237, %v166
        %v239 = vpop.permute.xlu0 %238
        %vm241 = vcmask 261120
        %v243 = vsel %vm241, %v221, 0
        %v246 = vsel %vm241, %v222, 0
        %v249 = vsel %vm241, %v223, 0
        %v252 = vsel %vm241, %v224, 0
        %254 = vmatprep.subr.mxu0 0.0
        %255 = vmatpush1.msra.mxu0 %v217
        %256 = vmatprep.subr.mxu0 0.0
        %257 = vmatpush1.msra.mxu0 %v218
        %258 = vmatprep.subr.mxu0 0.0
        %259 = vmatpush1.msra.mxu0 %v219
        %260 = vmatprep.subr.mxu0 0.0
        %261 = vmatpush1.msra.mxu0 %v220
        %262 = vmatprep.subr.mxu0 0.0
        %263 = vmatpush1.msra.mxu0 0.0
        %264 = vmatprep.subr.mxu0 0.0
        %265 = vmatpush1.msra.mxu0 0.0
        %266 = vmatprep.subr.mxu0 0.0
        %267 = vmatpush1.msra.mxu0 0.0
        %268 = vmatprep.subr.mxu0 0.0
        %269 = vmatpush1.msra.mxu0 0.0
        %270 = vmatprep.subr.mxu0 0.0
        %271 = vmatpush1.msra.mxu0 0.0
        %272 = vmatprep.subr.mxu0 0.0
        %273 = vmatpush1.msra.mxu0 0.0
        %274 = vmatprep.subr.mxu0 0.0
        %275 = vmatpush1.msra.mxu0 0.0
        %276 = vmatprep.subr.mxu0 0.0
        %277 = vmatpush1.msra.mxu0 0.0
        %278 = vmatprep.subr.mxu0 0.0
        %279 = vmatpush1.msra.mxu0 0.0
        %280 = vmatprep.subr.mxu0 0.0
        %281 = vmatpush1.msra.mxu0 0.0
        %282 = vmatprep.subr.mxu0 0.0
        %283 = vmatpush1.msra.mxu0 0.0
        %284 = vmatprep.subr.mxu0 0.0
        %285 = vmatpush1.msra.mxu0 0.0
        %286 = vmatprep.subr.mxu0 0.0
        %287 = vmatpush1.msra.mxu0 0.0
        %288 = vmatprep.subr.mxu0 0.0
        %289 = vmatpush1.msra.mxu0 0.0
        %290 = vmatprep.subr.mxu0 0.0
        %291 = vmatpush1.msra.mxu0 0.0
        %292 = vmatprep.subr.mxu0 0.0
        %293 = vmatpush1.msra.mxu0 0.0
        %294 = vmatprep.subr.mxu0 0.0
        %295 = vmatpush1.msra.mxu0 0.0
        %296 = vmatprep.subr.mxu0 0.0
        %297 = vmatpush1.msra.mxu0 0.0
        %298 = vmatprep.subr.mxu0 0.0
        %299 = vmatpush1.msra.mxu0 0.0
        %300 = vmatprep.subr.mxu0 0.0
        %301 = vmatpush1.msra.mxu0 0.0
        %302 = vmatprep.subr.mxu0 0.0
        %303 = vmatpush1.msra.mxu0 0.0
        %304 = vmatprep.subr.mxu0 0.0
        %305 = vmatpush1.msra.mxu0 0.0
        %306 = vmatprep.subr.mxu0 0.0
        %307 = vmatpush1.msra.mxu0 0.0
        %308 = vmatprep.subr.mxu0 0.0
        %309 = vmatpush1.msra.mxu0 0.0
        %310 = vmatprep.subr.mxu0 0.0
        %311 = vmatpush1.msra.mxu0 0.0
        %312 = vmatprep.subr.mxu0 0.0
        %313 = vmatpush1.msra.mxu0 0.0
        %314 = vmatprep.subr.mxu0 0.0
        %315 = vmatpush1.msra.mxu0 0.0
        %316 = vmatprep.subr.mxu0 0.0
        %317 = vmatpush1.msra.mxu0 0.0
        %318 = vmatprep.mubr.f32.mxu0 0.0
        %319 = vmatmul.mubr.f32.gmra.mrb[0].mxu0 %v243
        %v320 = vpop.f32.mrb[0].mxu0
        %v321 = vadd.f32 %v227, %v320
        %v322 = vpop.f32.mrb[0].mxu0
        %323 = vmatprep.mubr.f32.mxu0 0.0
        %324 = vmatmul.mubr.f32.gmra.mrb[0].mxu0 %v246
        %v325 = vpop.f32.mrb[0].mxu0
        %v326 = vadd.f32 %v231, %v325
        %v327 = vpop.f32.mrb[0].mxu0
        %328 = vmatprep.mubr.f32.mxu0 0.0
        %329 = vmatmul.mubr.f32.gmra.mrb[0].mxu0 %v249
        %v330 = vpop.f32.mrb[0].mxu0
        %v331 = vadd.f32 %v235, %v330
        %v332 = vpop.f32.mrb[0].mxu0
        %333 = vmatprep.mubr.f32.mxu0 0.0
        %334 = vmatmul.mubr.f32.gmra.mrb[0].mxu0 %v252
        %v335 = vpop.f32.mrb[0].mxu0
        %v336 = vadd.f32 %v239, %v335
        %v337 = vpop.f32.mrb[0].mxu0
        %338 = vdwg.mxu0
        %v339 = vtanh.pop %v321
        %v340 = vtanh.pop %v326
        %v341 = vtanh.pop %v331
        %v342 = vtanh.pop %v336
        %343 = vset.pattern.permute.xlu0 3
        %344 = vperm.xlu0 %343, %v163
        %v345 = vpop.permute.xlu0 %344
        %347 = vset.pattern.permute.xlu0 3
        %348 = vperm.xlu0 %347, %v164
        %v349 = vpop.permute.xlu0 %348
        %351 = vset.pattern.permute.xlu0 3
        %352 = vperm.xlu0 %351, %v165
        %v353 = vpop.permute.xlu0 %352
        %355 = vset.pattern.permute.xlu0 3
        %356 = vperm.xlu0 %355, %v166
        %v357 = vpop.permute.xlu0 %356
        %v359 = vmul.f32 %v345, %v339
        %v360 = vmul.f32 %v349, %v340
        %v361 = vmul.f32 %v353, %v341
        %v362 = vmul.f32 %v357, %v342
        %v363 = vadd.f32 %v359, %v360
        %v364 = vadd.f32 %v363, %v361
        %v365 = vadd.f32 %v364, %v362
        %v366 = vrot.slane %v365, 4
        %v367 = vadd.f32 %v365, %v366
        %v368 = vrot.slane %v367, 2
        %v369 = vadd.f32 %v367, %v368
        %v370 = vrot.slane %v369, 1
        %v371 = vadd.f32 %v369, %v370
        %372 = vset.pattern.permute.xlu0 4
        %373 = vperm.xlu0 %372, %v163
        %v374 = vpop.permute.xlu0 %373
        %v376 = vadd.f32 %v371, %v374
        %377 = vst [vmem:[%s158] sm:$0x1] %v376
        %s378 = sand.u32 %s93, 1
        %s379 = scalar_lea.sflag [#allocation3], %s378
        %s380 = sand.u32 %s93, 1
        %s381 = scalar_lea.vmem [#allocation2], %s380
        // Predicated region
        $region33: #{tpu_custom_call.1} parent=31 // pred_check
          %p382 = pneg %p103
        $region34: #{tpu_custom_call.1} parent=31 // pred_check_branch
          %384 = sbr.rel (%p382) target = $region36
        $region35: #{tpu_custom_call.1} parent=31 // pred_region
          %s386 = ssub.s32 16, 16
          %387 = vsyncadd %s379, %s386
          %s388 = smul.addr %s17, 16
          %s389 = scalar_lea.hbm %s3, %s388
          %s391 = sshll.u32 %s381, 4
          %s392 = int_to_ptr.vmem [resolvable:$true] %s391
          %394 = dma.vmem_to_hbm [thread:$0]  %s392, 16, %s389, %s379
        $region36: #{tpu_custom_call.1} parent=31 // pred_fallthru
          _
      $region32: #{tpu_custom_call.1} parent=5 // pred_fallthru
        _
      %p395 = scmp.le.s32.totalorder 2, %s12
      // Predicated region
      $region37: #{tpu_custom_call.1} parent=5 // pred_check
        %p396 = pneg %p395
      $region38: #{tpu_custom_call.1} parent=5 // pred_check_branch
        %398 = sbr.rel (%p396) target = $region40
      $region39: #{tpu_custom_call.1} parent=5 // pred_region
        %s399 = ssub.s32 %s12, 2
        // Predicated region
        $region41: #{tpu_custom_call.1} parent=39 // pred_check
          %p400 = pneg %p109
        $region42: #{tpu_custom_call.1} parent=39 // pred_check_branch
          %402 = sbr.rel (%p400) target = $region44
        $region43: #{tpu_custom_call.1} parent=39 // pred_region
          %s403 = sand.u32 %s94, 1
          %s404 = scalar_lea.sflag [#allocation3], %s403
          %s405 = sand.u32 %s94, 1
          %s406 = scalar_lea.vmem [#allocation2], %s405
          %407 = dma.done %s404, 16
        $region44: #{tpu_custom_call.1} parent=39 // pred_fallthru
          _
      $region40: #{tpu_custom_call.1} parent=5 // pred_fallthru
        _
    $region6: #{tpu_custom_call.1} parent=1 // loop_footer
      %s16 = sadd.s32 1, %s12
    $region7: #{tpu_custom_call.1} parent=1 // loop_footer_branch
      %11 = sbr.rel target = $region3
    $region8: #{tpu_custom_call.1} parent=1 // loop_exit
      _
    %408 = vsyncpa [#allocation3], 1
    %s409 = scalar_lea.sflag [#allocation3], 1
    %410 = vsyncpa %s409, 1

</llo_original>
